<compile_context>
chip_gen: v5e
topology: v5e:2x2
jax: 0.10.0
libtpu: 0.0.40
codegen_flags: <defaults>
</compile_context>

<pallas_src>
import jax
import jax.numpy as jnp
from jax.experimental import pallas as pl
from jax.experimental.pallas import tpu as pltpu

SIZES = [5, 16, 32, 64, 128, 256, 512, 3]
N_LAYERS = len(SIZES) - 1          # 7 Linear layers, ReLU after all but the last
OUT_DIM = SIZES[-1]                # 3

IN_PAD = 8                         # pad input features 5 -> 8 (proven MXU shape)
LAST_PAD = 128                     # final weight padded 512x3 -> 512x128 (MXU-friendly)
PAD_SIZES = [IN_PAD] + SIZES[1:-1] + [LAST_PAD]

COMPUTE_DTYPE = jnp.bfloat16       # MXU operand dtype on v5e/v6e/v7x


def _elementwise_dtype():
    """bf16 elementwise (bias+ReLU) on chips with a bf16 VALU (v6e/v7x); f32 elsewhere."""
    try:
        kind = jax.devices()[0].device_kind.lower()
    except Exception:
        kind = ""
    if "v6" in kind or "v7" in kind or "7x" in kind:
        return jnp.bfloat16
    return jnp.float32


def _make_kernel(ew_dtype):
    def gaia_mlp_kernel(x_ref, *refs):
        """Fused MLP forward on one (TB, IN_PAD) bf16 batch tile.

        refs = (w0, b0, ..., w6, b6, out_ref); weights bf16 (in_pad, out_pad),
        biases f32 (1, out_pad), all resident in VMEM across batch tiles.
        """
        out_ref = refs[-1]
        p = refs[:-1]

        h = x_ref[...]                                       # (TB, IN_PAD) bf16
        for i in range(N_LAYERS):
            w = p[2 * i][...]                                # bf16
            b = p[2 * i + 1][...]                            # f32
            acc = jnp.dot(h, w, preferred_element_type=jnp.float32)
            if i < N_LAYERS - 1:
                # bias + ReLU in ew_dtype (bf16 on v6e/v7x, f32 on v5e),
                # result already in the MXU operand dtype for the next layer.
                h = jnp.maximum(acc.astype(ew_dtype) + b.astype(ew_dtype),
                                0.0).astype(COMPUTE_DTYPE)
            else:
                # final layer: f32 bias-add, store only the 3 useful columns
                # into a narrow lane block (no 128-wide padded writeback).
                out_ref[...] = (acc + b)[:, :OUT_DIM].astype(out_ref.dtype)
    return gaia_mlp_kernel


def init_params(key):
    """Synthetic Kaiming-uniform-ish parameters, stored kernel-ready:
    W_i: (in_pad, out_pad) bf16 (zero-padded), b_i: (1, out_pad) f32."""
    params = []
    for i in range(N_LAYERS):
        fan_in, fan_out = SIZES[i], SIZES[i + 1]
        in_pad, out_pad = PAD_SIZES[i], PAD_SIZES[i + 1]
        key, kw, kb = jax.random.split(key, 3)
        bound = 1.0 / float(fan_in) ** 0.5
        w = jax.random.uniform(kw, (fan_in, fan_out), jnp.float32, -bound, bound)
        b = jax.random.uniform(kb, (1, fan_out), jnp.float32, -bound, bound)
        wp = jnp.zeros((in_pad, out_pad), jnp.float32).at[:fan_in, :fan_out].set(w)
        bp = jnp.zeros((1, out_pad), jnp.float32).at[:, :fan_out].set(b)
        params.append(wp.astype(COMPUTE_DTYPE))
        params.append(bp)
    return params


def _round_up(a, m):
    return (a + m - 1) // m * m


def gaia_regressor_forward(x, params, *, tb=1024, ew_dtype=None):
    """x: (B, 5) f32 -> (B, 3) f32."""
    B, F = x.shape
    assert F == SIZES[0], "Input tensor does not match required dimensions"
    if ew_dtype is None:
        ew_dtype = _elementwise_dtype()

    # Batch tile: multiple of 16 (bf16 sublane packing), capped by the batch,
    # and split into >=2 tiles for large batches so v7x's two TCs both work.
    Bt = _round_up(B, 16)
    tb = min(tb, Bt)
    if Bt // tb < 2 and Bt >= 1024:
        tb = _round_up(pl.cdiv(Bt, 2), 16)
    Bp = _round_up(B, tb)
    grid = (Bp // tb,)

    # bf16 input, features padded 5 -> IN_PAD, batch padded to a tile multiple.
    xp = jnp.pad(x.astype(COMPUTE_DTYPE), ((0, Bp - B), (0, IN_PAD - F)))

    def resident(shape):
        # Same block every grid step -> Pallas keeps it resident, no re-DMA.
        return pl.BlockSpec(shape, lambda _: (0, 0))

    in_specs = [pl.BlockSpec((tb, IN_PAD), lambda i: (i, 0))]
    for li in range(N_LAYERS):
        in_specs.append(resident(params[2 * li].shape))      # weight
        in_specs.append(resident(params[2 * li + 1].shape))  # bias

    flops = 2 * Bp * sum(PAD_SIZES[i] * PAD_SIZES[i + 1] for i in range(N_LAYERS))
    param_bytes = sum(int(p.size) * p.dtype.itemsize for p in params)
    bytes_accessed = Bp * IN_PAD * 2 + Bp * OUT_DIM * 4 + param_bytes

    out = pl.pallas_call(
        _make_kernel(ew_dtype),
        out_shape=jax.ShapeDtypeStruct((Bp, OUT_DIM), jnp.float32),
        grid=grid,
        in_specs=in_specs,
        out_specs=pl.BlockSpec((tb, OUT_DIM), lambda i: (i, 0)),
        compiler_params=pltpu.CompilerParams(
            dimension_semantics=("parallel",),       # shard batch tiles across TCs
            vmem_limit_bytes=32 * 1024 * 1024),      # lift v5e's 16 MiB scoped default
        cost_estimate=pl.CostEstimate(
            flops=flops, transcendentals=0, bytes_accessed=bytes_accessed),
    )(xp, *params)

    return out[:B]


def reference_forward(x, params, ew_dtype):
    """Pure-JAX reference following the same numerics as the kernel."""
    B, F = x.shape
    h = jnp.pad(x.astype(COMPUTE_DTYPE), ((0, 0), (0, IN_PAD - F)))
    for i in range(N_LAYERS):
        w, b = params[2 * i], params[2 * i + 1]
        acc = jnp.dot(h, w, preferred_element_type=jnp.float32)
        if i < N_LAYERS - 1:
            h = jnp.maximum(acc.astype(ew_dtype) + b.astype(ew_dtype),
                            0.0).astype(COMPUTE_DTYPE)
        else:
            h = (acc + b)[:, :OUT_DIM]
    return h


if __name__ == "__main__":
    key = jax.random.PRNGKey(0)
    key, kx1, kx2 = jax.random.split(key, 3)
    params = init_params(key)
    ew = _elementwise_dtype()

    # small, sublane-aligned batch
    x = jax.random.normal(kx1, (8, SIZES[0]), jnp.float32)
    out = jax.block_until_ready(gaia_regressor_forward(x, params))
    ref = reference_forward(x, params, ew)
    assert out.shape == (8, OUT_DIM)
    assert jnp.allclose(out, ref, atol=1e-2, rtol=1e-2), "mismatch vs reference (B=8)"

    # non-aligned batch with a multi-tile grid (exercises batch padding + tiling)
    x2 = jax.random.normal(kx2, (24, SIZES[0]), jnp.float32)
    out2 = jax.block_until_ready(gaia_regressor_forward(x2, params, tb=16))
    ref2 = reference_forward(x2, params, ew)
    assert out2.shape == (24, OUT_DIM)
    assert jnp.allclose(out2, ref2, atol=1e-2, rtol=1e-2), "mismatch vs reference (B=24)"

    print("KERNEL_OK")
</pallas_src>

<mosaic_0001>
module attributes {stable_mosaic.version = 11 : i64} {
  func.func @gaia_mlp_kernel(%arg0: i32, %arg1: memref<16x8xbf16, #tpu.memory_space<vmem>>, %arg2: memref<8x16xbf16, #tpu.memory_space<vmem>>, %arg3: memref<1x16xf32, #tpu.memory_space<vmem>>, %arg4: memref<16x32xbf16, #tpu.memory_space<vmem>>, %arg5: memref<1x32xf32, #tpu.memory_space<vmem>>, %arg6: memref<32x64xbf16, #tpu.memory_space<vmem>>, %arg7: memref<1x64xf32, #tpu.memory_space<vmem>>, %arg8: memref<64x128xbf16, #tpu.memory_space<vmem>>, %arg9: memref<1x128xf32, #tpu.memory_space<vmem>>, %arg10: memref<128x256xbf16, #tpu.memory_space<vmem>>, %arg11: memref<1x256xf32, #tpu.memory_space<vmem>>, %arg12: memref<256x512xbf16, #tpu.memory_space<vmem>>, %arg13: memref<1x512xf32, #tpu.memory_space<vmem>>, %arg14: memref<512x128xbf16, #tpu.memory_space<vmem>>, %arg15: memref<1x128xf32, #tpu.memory_space<vmem>>, %arg16: memref<16x3xf32, #tpu.memory_space<vmem>>) attributes {dimension_semantics = [#tpu.dimension_semantics<parallel>], iteration_bounds = array<i64: 1>, scalar_prefetch = 0 : i64, scratch_operands = 0 : i64, tpu.core_type = #tpu.core_type<tc>, window_params = [{transform_indices = @transform_0, window_bounds = array<i64: 16, 8>}, {pipeline_mode = #tpu.pipeline_mode<synchronous>, transform_indices = @transform_1, window_bounds = array<i64: 8, 16>}, {pipeline_mode = #tpu.pipeline_mode<synchronous>, transform_indices = @transform_2, window_bounds = array<i64: 1, 16>}, {pipeline_mode = #tpu.pipeline_mode<synchronous>, transform_indices = @transform_3, window_bounds = array<i64: 16, 32>}, {pipeline_mode = #tpu.pipeline_mode<synchronous>, transform_indices = @transform_4, window_bounds = array<i64: 1, 32>}, {pipeline_mode = #tpu.pipeline_mode<synchronous>, transform_indices = @transform_5, window_bounds = array<i64: 32, 64>}, {pipeline_mode = #tpu.pipeline_mode<synchronous>, transform_indices = @transform_6, window_bounds = array<i64: 1, 64>}, {pipeline_mode = #tpu.pipeline_mode<synchronous>, transform_indices = @transform_7, window_bounds = array<i64: 64, 128>}, {pipeline_mode = #tpu.pipeline_mode<synchronous>, transform_indices = @transform_8, window_bounds = array<i64: 1, 128>}, {pipeline_mode = #tpu.pipeline_mode<synchronous>, transform_indices = @transform_9, window_bounds = array<i64: 128, 256>}, {pipeline_mode = #tpu.pipeline_mode<synchronous>, transform_indices = @transform_10, window_bounds = array<i64: 1, 256>}, {pipeline_mode = #tpu.pipeline_mode<synchronous>, transform_indices = @transform_11, window_bounds = array<i64: 256, 512>}, {pipeline_mode = #tpu.pipeline_mode<synchronous>, transform_indices = @transform_12, window_bounds = array<i64: 1, 512>}, {pipeline_mode = #tpu.pipeline_mode<synchronous>, transform_indices = @transform_13, window_bounds = array<i64: 512, 128>}, {pipeline_mode = #tpu.pipeline_mode<synchronous>, transform_indices = @transform_14, window_bounds = array<i64: 1, 128>}, {transform_indices = @transform_15, window_bounds = array<i64: 16, 3>}]} {
    %c0 = arith.constant 0 : index
    %c0_0 = arith.constant 0 : index
    %0 = vector.load %arg1[%c0, %c0_0] : memref<16x8xbf16, #tpu.memory_space<vmem>>, vector<16x8xbf16>
    %c0_1 = arith.constant 0 : index
    %c0_2 = arith.constant 0 : index
    %1 = vector.load %arg2[%c0_1, %c0_2] : memref<8x16xbf16, #tpu.memory_space<vmem>>, vector<8x16xbf16>
    %c0_3 = arith.constant 0 : index
    %c0_4 = arith.constant 0 : index
    %2 = vector.load %arg3[%c0_3, %c0_4] : memref<1x16xf32, #tpu.memory_space<vmem>>, vector<1x16xf32>
    %cst = arith.constant dense<0.000000e+00> : vector<16x16xf32>
    %3 = tpu.matmul %0, %1, %cst {dimension_numbers = #tpu.dot_dimension_numbers<[1], [0], [0], [1], [0, 0, 1, 1], [], []>} : vector<16x8xbf16>, vector<8x16xbf16>, vector<16x16xf32> -> vector<16x16xf32>
    %4 = vector.broadcast %2 : vector<1x16xf32> to vector<16x16xf32>
    %5 = arith.addf %3, %4 : vector<16x16xf32>
    %cst_5 = arith.constant 0.000000e+00 : f32
    %6 = vector.broadcast %cst_5 : f32 to vector<16x16xf32>
    %7 = arith.maximumf %5, %6 : vector<16x16xf32>
    %8 = arith.truncf %7 : vector<16x16xf32> to vector<16x16xbf16>
    %c0_6 = arith.constant 0 : index
    %c0_7 = arith.constant 0 : index
    %9 = vector.load %arg4[%c0_6, %c0_7] : memref<16x32xbf16, #tpu.memory_space<vmem>>, vector<16x32xbf16>
    %c0_8 = arith.constant 0 : index
    %c0_9 = arith.constant 0 : index
    %10 = vector.load %arg5[%c0_8, %c0_9] : memref<1x32xf32, #tpu.memory_space<vmem>>, vector<1x32xf32>
    %cst_10 = arith.constant dense<0.000000e+00> : vector<16x32xf32>
    %11 = tpu.matmul %8, %9, %cst_10 {dimension_numbers = #tpu.dot_dimension_numbers<[1], [0], [0], [1], [0, 0, 1, 1], [], []>} : vector<16x16xbf16>, vector<16x32xbf16>, vector<16x32xf32> -> vector<16x32xf32>
    %12 = vector.broadcast %10 : vector<1x32xf32> to vector<16x32xf32>
    %13 = arith.addf %11, %12 : vector<16x32xf32>
    %cst_11 = arith.constant 0.000000e+00 : f32
    %14 = vector.broadcast %cst_11 : f32 to vector<16x32xf32>
    %15 = arith.maximumf %13, %14 : vector<16x32xf32>
    %16 = arith.truncf %15 : vector<16x32xf32> to vector<16x32xbf16>
    %c0_12 = arith.constant 0 : index
    %c0_13 = arith.constant 0 : index
    %17 = vector.load %arg6[%c0_12, %c0_13] : memref<32x64xbf16, #tpu.memory_space<vmem>>, vector<32x64xbf16>
    %c0_14 = arith.constant 0 : index
    %c0_15 = arith.constant 0 : index
    %18 = vector.load %arg7[%c0_14, %c0_15] : memref<1x64xf32, #tpu.memory_space<vmem>>, vector<1x64xf32>
    %cst_16 = arith.constant dense<0.000000e+00> : vector<16x64xf32>
    %19 = tpu.matmul %16, %17, %cst_16 {dimension_numbers = #tpu.dot_dimension_numbers<[1], [0], [0], [1], [0, 0, 1, 1], [], []>} : vector<16x32xbf16>, vector<32x64xbf16>, vector<16x64xf32> -> vector<16x64xf32>
    %20 = vector.broadcast %18 : vector<1x64xf32> to vector<16x64xf32>
    %21 = arith.addf %19, %20 : vector<16x64xf32>
    %cst_17 = arith.constant 0.000000e+00 : f32
    %22 = vector.broadcast %cst_17 : f32 to vector<16x64xf32>
    %23 = arith.maximumf %21, %22 : vector<16x64xf32>
    %24 = arith.truncf %23 : vector<16x64xf32> to vector<16x64xbf16>
    %c0_18 = arith.constant 0 : index
    %c0_19 = arith.constant 0 : index
    %25 = vector.load %arg8[%c0_18, %c0_19] : memref<64x128xbf16, #tpu.memory_space<vmem>>, vector<64x128xbf16>
    %c0_20 = arith.constant 0 : index
    %c0_21 = arith.constant 0 : index
    %26 = vector.load %arg9[%c0_20, %c0_21] : memref<1x128xf32, #tpu.memory_space<vmem>>, vector<1x128xf32>
    %cst_22 = arith.constant dense<0.000000e+00> : vector<16x128xf32>
    %27 = tpu.matmul %24, %25, %cst_22 {dimension_numbers = #tpu.dot_dimension_numbers<[1], [0], [0], [1], [0, 0, 1, 1], [], []>} : vector<16x64xbf16>, vector<64x128xbf16>, vector<16x128xf32> -> vector<16x128xf32>
    %28 = vector.broadcast %26 : vector<1x128xf32> to vector<16x128xf32>
    %29 = arith.addf %27, %28 : vector<16x128xf32>
    %cst_23 = arith.constant 0.000000e+00 : f32
    %30 = vector.broadcast %cst_23 : f32 to vector<16x128xf32>
    %31 = arith.maximumf %29, %30 : vector<16x128xf32>
    %32 = arith.truncf %31 : vector<16x128xf32> to vector<16x128xbf16>
    %c0_24 = arith.constant 0 : index
    %c0_25 = arith.constant 0 : index
    %33 = vector.load %arg10[%c0_24, %c0_25] : memref<128x256xbf16, #tpu.memory_space<vmem>>, vector<128x256xbf16>
    %c0_26 = arith.constant 0 : index
    %c0_27 = arith.constant 0 : index
    %34 = vector.load %arg11[%c0_26, %c0_27] : memref<1x256xf32, #tpu.memory_space<vmem>>, vector<1x256xf32>
    %cst_28 = arith.constant dense<0.000000e+00> : vector<16x256xf32>
    %35 = tpu.matmul %32, %33, %cst_28 {dimension_numbers = #tpu.dot_dimension_numbers<[1], [0], [0], [1], [0, 0, 1, 1], [], []>} : vector<16x128xbf16>, vector<128x256xbf16>, vector<16x256xf32> -> vector<16x256xf32>
    %36 = vector.broadcast %34 : vector<1x256xf32> to vector<16x256xf32>
    %37 = arith.addf %35, %36 : vector<16x256xf32>
    %cst_29 = arith.constant 0.000000e+00 : f32
    %38 = vector.broadcast %cst_29 : f32 to vector<16x256xf32>
    %39 = arith.maximumf %37, %38 : vector<16x256xf32>
    %40 = arith.truncf %39 : vector<16x256xf32> to vector<16x256xbf16>
    %c0_30 = arith.constant 0 : index
    %c0_31 = arith.constant 0 : index
    %41 = vector.load %arg12[%c0_30, %c0_31] : memref<256x512xbf16, #tpu.memory_space<vmem>>, vector<256x512xbf16>
    %c0_32 = arith.constant 0 : index
    %c0_33 = arith.constant 0 : index
    %42 = vector.load %arg13[%c0_32, %c0_33] : memref<1x512xf32, #tpu.memory_space<vmem>>, vector<1x512xf32>
    %cst_34 = arith.constant dense<0.000000e+00> : vector<16x512xf32>
    %43 = tpu.matmul %40, %41, %cst_34 {dimension_numbers = #tpu.dot_dimension_numbers<[1], [0], [0], [1], [0, 0, 1, 1], [], []>} : vector<16x256xbf16>, vector<256x512xbf16>, vector<16x512xf32> -> vector<16x512xf32>
    %44 = vector.broadcast %42 : vector<1x512xf32> to vector<16x512xf32>
    %45 = arith.addf %43, %44 : vector<16x512xf32>
    %cst_35 = arith.constant 0.000000e+00 : f32
    %46 = vector.broadcast %cst_35 : f32 to vector<16x512xf32>
    %47 = arith.maximumf %45, %46 : vector<16x512xf32>
    %48 = arith.truncf %47 : vector<16x512xf32> to vector<16x512xbf16>
    %c0_36 = arith.constant 0 : index
    %c0_37 = arith.constant 0 : index
    %49 = vector.load %arg14[%c0_36, %c0_37] : memref<512x128xbf16, #tpu.memory_space<vmem>>, vector<512x128xbf16>
    %c0_38 = arith.constant 0 : index
    %c0_39 = arith.constant 0 : index
    %50 = vector.load %arg15[%c0_38, %c0_39] : memref<1x128xf32, #tpu.memory_space<vmem>>, vector<1x128xf32>
    %cst_40 = arith.constant dense<0.000000e+00> : vector<16x128xf32>
    %51 = tpu.matmul %48, %49, %cst_40 {dimension_numbers = #tpu.dot_dimension_numbers<[1], [0], [0], [1], [0, 0, 1, 1], [], []>} : vector<16x512xbf16>, vector<512x128xbf16>, vector<16x128xf32> -> vector<16x128xf32>
    %52 = vector.broadcast %50 : vector<1x128xf32> to vector<16x128xf32>
    %53 = arith.addf %51, %52 : vector<16x128xf32>
    %54 = vector.extract_strided_slice %53 {offsets = [0, 0], sizes = [16, 3], strides = [1, 1]} : vector<16x128xf32> to vector<16x3xf32>
    %c0_41 = arith.constant 0 : index
    %c0_42 = arith.constant 0 : index
    %55 = vector.load %arg16[%c0_41, %c0_42] : memref<16x3xf32, #tpu.memory_space<vmem>>, vector<16x3xf32>
    tpu.vector_store %arg16[%c0_41, %c0_42], %54 {strides = array<i32>} : memref<16x3xf32, #tpu.memory_space<vmem>>, vector<16x3xf32>,
    return
  }
  func.func @transform_0(%arg0: i32) -> (i32, i32) {
    %c0_i32 = arith.constant 0 : i32
    %c0_i32_0 = arith.constant 0 : i32
    return %arg0, %c0_i32 : i32, i32
  }
  func.func @transform_1(%arg0: i32) -> (i32, i32) {
    %c0_i32 = arith.constant 0 : i32
    %c0_i32_0 = arith.constant 0 : i32
    %c0_i32_1 = arith.constant 0 : i32
    return %c0_i32, %c0_i32_0 : i32, i32
  }
  func.func @transform_2(%arg0: i32) -> (i32, i32) {
    %c0_i32 = arith.constant 0 : i32
    %c0_i32_0 = arith.constant 0 : i32
    %c0_i32_1 = arith.constant 0 : i32
    return %c0_i32, %c0_i32_0 : i32, i32
  }
  func.func @transform_3(%arg0: i32) -> (i32, i32) {
    %c0_i32 = arith.constant 0 : i32
    %c0_i32_0 = arith.constant 0 : i32
    %c0_i32_1 = arith.constant 0 : i32
    return %c0_i32, %c0_i32_0 : i32, i32
  }
  func.func @transform_4(%arg0: i32) -> (i32, i32) {
    %c0_i32 = arith.constant 0 : i32
    %c0_i32_0 = arith.constant 0 : i32
    %c0_i32_1 = arith.constant 0 : i32
    return %c0_i32, %c0_i32_0 : i32, i32
  }
  func.func @transform_5(%arg0: i32) -> (i32, i32) {
    %c0_i32 = arith.constant 0 : i32
    %c0_i32_0 = arith.constant 0 : i32
    %c0_i32_1 = arith.constant 0 : i32
    return %c0_i32, %c0_i32_0 : i32, i32
  }
  func.func @transform_6(%arg0: i32) -> (i32, i32) {
    %c0_i32 = arith.constant 0 : i32
    %c0_i32_0 = arith.constant 0 : i32
    %c0_i32_1 = arith.constant 0 : i32
    return %c0_i32, %c0_i32_0 : i32, i32
  }
  func.func @transform_7(%arg0: i32) -> (i32, i32) {
    %c0_i32 = arith.constant 0 : i32
    %c0_i32_0 = arith.constant 0 : i32
    %c0_i32_1 = arith.constant 0 : i32
    return %c0_i32, %c0_i32_0 : i32, i32
  }
  func.func @transform_8(%arg0: i32) -> (i32, i32) {
    %c0_i32 = arith.constant 0 : i32
    %c0_i32_0 = arith.constant 0 : i32
    %c0_i32_1 = arith.constant 0 : i32
    return %c0_i32, %c0_i32_0 : i32, i32
  }
  func.func @transform_9(%arg0: i32) -> (i32, i32) {
    %c0_i32 = arith.constant 0 : i32
    %c0_i32_0 = arith.constant 0 : i32
    %c0_i32_1 = arith.constant 0 : i32
    return %c0_i32, %c0_i32_0 : i32, i32
  }
  func.func @transform_10(%arg0: i32) -> (i32, i32) {
    %c0_i32 = arith.constant 0 : i32
    %c0_i32_0 = arith.constant 0 : i32
    %c0_i32_1 = arith.constant 0 : i32
    return %c0_i32, %c0_i32_0 : i32, i32
  }
  func.func @transform_11(%arg0: i32) -> (i32, i32) {
    %c0_i32 = arith.constant 0 : i32
    %c0_i32_0 = arith.constant 0 : i32
    %c0_i32_1 = arith.constant 0 : i32
    return %c0_i32, %c0_i32_0 : i32, i32
  }
  func.func @transform_12(%arg0: i32) -> (i32, i32) {
    %c0_i32 = arith.constant 0 : i32
    %c0_i32_0 = arith.constant 0 : i32
    %c0_i32_1 = arith.constant 0 : i32
    return %c0_i32, %c0_i32_0 : i32, i32
  }
  func.func @transform_13(%arg0: i32) -> (i32, i32) {
    %c0_i32 = arith.constant 0 : i32
    %c0_i32_0 = arith.constant 0 : i32
    %c0_i32_1 = arith.constant 0 : i32
    return %c0_i32, %c0_i32_0 : i32, i32
  }
  func.func @transform_14(%arg0: i32) -> (i32, i32) {
    %c0_i32 = arith.constant 0 : i32
    %c0_i32_0 = arith.constant 0 : i32
    %c0_i32_1 = arith.constant 0 : i32
    return %c0_i32, %c0_i32_0 : i32, i32
  }
  func.func @transform_15(%arg0: i32) -> (i32, i32) {
    %c0_i32 = arith.constant 0 : i32
    %c0_i32_0 = arith.constant 0 : i32
    return %arg0, %c0_i32 : i32, i32
  }
}

</mosaic_0001>

<llo_original>
// kernel: tpu_custom_call.1
$region0: #{tpu_custom_call.1}
  #allocation0 [shape = 'u32[]', space=smem, size = 0x4, offset = 0x4, fixed_abs, tag = 'smem constant byte address 0x4 - core index']
  #allocation1 [shape = 'u32[72,128]{1,0:T(1,128)}', space=vmem, size = 0x9000, scoped, tag = 'internal scratch']
  %s0 = inlined_call_operand.vmem [shape: bf16[16,8], index: 0, kind: input, shape index: {}]
  %s1 = inlined_call_operand.hbm [shape: bf16[8,16], index: 1, kind: input, shape index: {}]
  %s2 = inlined_call_operand.hbm [shape: f32[1,16], index: 2, kind: input, shape index: {}]
  %s3 = inlined_call_operand.hbm [shape: bf16[16,32], index: 3, kind: input, shape index: {}]
  %s4 = inlined_call_operand.hbm [shape: f32[1,32], index: 4, kind: input, shape index: {}]
  %s5 = inlined_call_operand.vmem [shape: bf16[32,64], index: 5, kind: input, shape index: {}]
  %s6 = inlined_call_operand.hbm [shape: f32[1,64], index: 6, kind: input, shape index: {}]
  %s7 = inlined_call_operand.hbm [shape: bf16[64,128], index: 7, kind: input, shape index: {}]
  %s8 = inlined_call_operand.hbm [shape: f32[1,128], index: 8, kind: input, shape index: {}]
  %s9 = inlined_call_operand.hbm [shape: bf16[128,256], index: 9, kind: input, shape index: {}]
  %s10 = inlined_call_operand.hbm [shape: f32[1,256], index: 10, kind: input, shape index: {}]
  %s11 = inlined_call_operand.hbm [shape: bf16[256,512], index: 11, kind: input, shape index: {}]
  %s12 = inlined_call_operand.vmem [shape: f32[1,512], index: 12, kind: input, shape index: {}]
  %s13 = inlined_call_operand.hbm [shape: bf16[512,128], index: 13, kind: input, shape index: {}]
  %s14 = inlined_call_operand.vmem [shape: f32[1,128], index: 14, kind: input, shape index: {}]
  %s15 = inlined_call_operand.vmem [shape: f32[16,3], index: 15, kind: output, shape index: {}]
  %s16 = sld [smem:[#allocation0]]
  $region114: #{tpu_custom_call.1} parent=0
    _
  %s18 = ssub.s32 1, %s16
  %s19 = scalar_select 0, %s18, %s16
  $region1: #{tpu_custom_call.1} parent=0
    #allocation2 [shape = 'u8[2048]{0}', space=vmem, size = 0x800, scoped, tag = 'input window, operand 1, single buffered']
    #allocation3 [shape = 's32[1]{0}', space=sflag, size = 0x4, scoped, tag = 'scoped memory for tpu_custom_call.1']
    #allocation4 [shape = 'u8[512]{0}', space=vmem, size = 0x400, scoped, tag = 'input window, operand 2, single buffered']
    #allocation5 [shape = 's32[1]{0}', space=sflag, size = 0x4, scoped, tag = 'scoped memory for tpu_custom_call.1']
    #allocation6 [shape = 'u8[4096]{0}', space=vmem, size = 0x1000, scoped, tag = 'input window, operand 3, single buffered']
    #allocation7 [shape = 'u8[512]{0}', space=vmem, size = 0x400, scoped, tag = 'input window, operand 4, single buffered']
    #allocation8 [shape = 's32[1]{0}', space=sflag, size = 0x4, scoped, tag = 'scoped memory for tpu_custom_call.1']
    #allocation9 [shape = 'u8[512]{0}', space=vmem, size = 0x400, scoped, tag = 'input window, operand 6, single buffered']
    #allocation10 [shape = 'u8[16384]{0}', space=vmem, size = 0x4000, scoped, tag = 'input window, operand 7, single buffered']
    #allocation11 [shape = 's32[1]{0}', space=sflag, size = 0x4, scoped, tag = 'scoped memory for tpu_custom_call.1']
    #allocation12 [shape = 'u8[512]{0}', space=vmem, size = 0x400, scoped, tag = 'input window, operand 8, single buffered']
    #allocation13 [shape = 'u8[65536]{0}', space=vmem, size = 0x10000, scoped, tag = 'input window, operand 9, single buffered']
    #allocation14 [shape = 's32[1]{0}', space=sflag, size = 0x4, scoped, tag = 'scoped memory for tpu_custom_call.1']
    #allocation15 [shape = 'u8[1024]{0}', space=vmem, size = 0x400, scoped, tag = 'input window, operand 10, single buffered']
    #allocation16 [shape = 'u8[262144]{0}', space=vmem, size = 0x40000, scoped, tag = 'input window, operand 11, single buffered']
    #allocation17 [shape = 's32[1]{0}', space=sflag, size = 0x4, scoped, tag = 'scoped memory for tpu_custom_call.1']
    #allocation18 [shape = 'u8[131072]{0}', space=vmem, size = 0x20000, scoped, tag = 'input window, operand 13, single buffered']
    %20 = vsyncpa [#allocation3], 0
    %21 = vsyncpa [#allocation5], 0
    %22 = vsyncpa [#allocation8], 0
    %23 = vsyncpa [#allocation11], 0
    %24 = vsyncpa [#allocation14], 0
    %25 = vsyncpa [#allocation17], 0
    // Predicated region
    $region2: #{tpu_custom_call.1} parent=1 // pred_check
      _
    $region3: #{tpu_custom_call.1} parent=1 // pred_check_branch
      %27 = sbr.rel (0) target = $region5
    $region4: #{tpu_custom_call.1} parent=1 // pred_region
      _
    $region5: #{tpu_custom_call.1} parent=1 // pred_fallthru
      _
    // Predicated region
    $region6: #{tpu_custom_call.1} parent=1 // pred_check
      _
    $region7: #{tpu_custom_call.1} parent=1 // pred_check_branch
      %29 = sbr.rel (0) target = $region9
    $region8: #{tpu_custom_call.1} parent=1 // pred_region
      %31 = vsyncadd [#allocation3], 0
      %s33 = sshll.u32 %s1, 4
      %s34 = int_to_ptr.hbm [resolvable:$true] %s33
      %s35 = sshll.u32 [#allocation2], 4
      %s36 = int_to_ptr.vmem [resolvable:$true] %s35
      %38 = dma.hbm_to_vmem [thread:$0]  %s34, 64, %s36, [#allocation3]
    $region9: #{tpu_custom_call.1} parent=1 // pred_fallthru
      _
    // Predicated region
    $region10: #{tpu_custom_call.1} parent=1 // pred_check
      _
    $region11: #{tpu_custom_call.1} parent=1 // pred_check_branch
      %40 = sbr.rel (0) target = $region13
    $region12: #{tpu_custom_call.1} parent=1 // pred_region
      %42 = vsyncadd [#allocation5], 0
      %s44 = sshll.u32 %s2, 4
      %s45 = int_to_ptr.hbm [resolvable:$true] %s44
      %s46 = sshll.u32 [#allocation4], 4
      %s47 = int_to_ptr.vmem [resolvable:$true] %s46
      %49 = dma.hbm_to_vmem [thread:$0]  %s45, 16, %s47, [#allocation5]
    $region13: #{tpu_custom_call.1} parent=1 // pred_fallthru
      _
    // Predicated region
    $region14: #{tpu_custom_call.1} parent=1 // pred_check
      _
    $region15: #{tpu_custom_call.1} parent=1 // pred_check_branch
      %51 = sbr.rel (0) target = $region17
    $region16: #{tpu_custom_call.1} parent=1 // pred_region
      %53 = vsyncadd [#allocation5], 0
      %s54 = sshll.u32 %s3, 4
      %s55 = int_to_ptr.hbm [resolvable:$true] %s54
      %s56 = sshll.u32 [#allocation6], 4
      %s57 = int_to_ptr.vmem [resolvable:$true] %s56
      %62 = dma.hbm_to_vmem [thread:$0]  %s55, 128, %s57, [#allocation5], 64, 64, 4
    $region17: #{tpu_custom_call.1} parent=1 // pred_fallthru
      _
    // Predicated region
    $region18: #{tpu_custom_call.1} parent=1 // pred_check
      _
    $region19: #{tpu_custom_call.1} parent=1 // pred_check_branch
      %64 = sbr.rel (0) target = $region21
    $region20: #{tpu_custom_call.1} parent=1 // pred_region
      %66 = vsyncadd [#allocation8], 0
      %s68 = sshll.u32 %s4, 4
      %s69 = int_to_ptr.hbm [resolvable:$true] %s68
      %s70 = sshll.u32 [#allocation7], 4
      %s71 = int_to_ptr.vmem [resolvable:$true] %s70
      %73 = dma.hbm_to_vmem [thread:$0]  %s69, 16, %s71, [#allocation8]
    $region21: #{tpu_custom_call.1} parent=1 // pred_fallthru
      _
    // Predicated region
    $region22: #{tpu_custom_call.1} parent=1 // pred_check
      _
    $region23: #{tpu_custom_call.1} parent=1 // pred_check_branch
      %75 = sbr.rel (0) target = $region25
    $region24: #{tpu_custom_call.1} parent=1 // pred_region
      _
    $region25: #{tpu_custom_call.1} parent=1 // pred_fallthru
      _
    // Predicated region
    $region26: #{tpu_custom_call.1} parent=1 // pred_check
      _
    $region27: #{tpu_custom_call.1} parent=1 // pred_check_branch
      %77 = sbr.rel (0) target = $region29
    $region28: #{tpu_custom_call.1} parent=1 // pred_region
      %79 = vsyncadd [#allocation8], 0
      %s81 = sshll.u32 %s6, 4
      %s82 = int_to_ptr.hbm [resolvable:$true] %s81
      %s83 = sshll.u32 [#allocation9], 4
      %s84 = int_to_ptr.vmem [resolvable:$true] %s83
      %86 = dma.hbm_to_vmem [thread:$0]  %s82, 16, %s84, [#allocation8]
    $region29: #{tpu_custom_call.1} parent=1 // pred_fallthru
      _
    // Predicated region
    $region30: #{tpu_custom_call.1} parent=1 // pred_check
      _
    $region31: #{tpu_custom_call.1} parent=1 // pred_check_branch
      %88 = sbr.rel (0) target = $region33
    $region32: #{tpu_custom_call.1} parent=1 // pred_region
      %90 = vsyncadd [#allocation11], 0
      %s91 = sshll.u32 %s7, 4
      %s92 = int_to_ptr.hbm [resolvable:$true] %s91
      %s93 = sshll.u32 [#allocation10], 4
      %s94 = int_to_ptr.vmem [resolvable:$true] %s93
      %99 = dma.hbm_to_vmem [thread:$0]  %s92, 512, %s94, [#allocation11], 64, 64, 4
    $region33: #{tpu_custom_call.1} parent=1 // pred_fallthru
      _
    // Predicated region
    $region34: #{tpu_custom_call.1} parent=1 // pred_check
      _
    $region35: #{tpu_custom_call.1} parent=1 // pred_check_branch
      %101 = sbr.rel (0) target = $region37
    $region36: #{tpu_custom_call.1} parent=1 // pred_region
      %103 = vsyncadd [#allocation11], 0
      %s105 = sshll.u32 %s8, 4
      %s106 = int_to_ptr.hbm [resolvable:$true] %s105
      %s107 = sshll.u32 [#allocation12], 4
      %s108 = int_to_ptr.vmem [resolvable:$true] %s107
      %110 = dma.hbm_to_vmem [thread:$0]  %s106, 16, %s108, [#allocation11]
    $region37: #{tpu_custom_call.1} parent=1 // pred_fallthru
      _
    // Predicated region
    $region38: #{tpu_custom_call.1} parent=1 // pred_check
      _
    $region39: #{tpu_custom_call.1} parent=1 // pred_check_branch
      %112 = sbr.rel (0) target = $region41
    $region40: #{tpu_custom_call.1} parent=1 // pred_region
      %114 = vsyncadd [#allocation14], 0
      %s115 = sshll.u32 %s9, 4
      %s116 = int_to_ptr.hbm [resolvable:$true] %s115
      %s117 = sshll.u32 [#allocation13], 4
      %s118 = int_to_ptr.vmem [resolvable:$true] %s117
      %123 = dma.hbm_to_vmem [thread:$0]  %s116, 2048, %s118, [#allocation14], 128, 128, 8
    $region41: #{tpu_custom_call.1} parent=1 // pred_fallthru
      _
    // Predicated region
    $region42: #{tpu_custom_call.1} parent=1 // pred_check
      _
    $region43: #{tpu_custom_call.1} parent=1 // pred_check_branch
      %125 = sbr.rel (0) target = $region45
    $region44: #{tpu_custom_call.1} parent=1 // pred_region
      %127 = vsyncadd [#allocation14], 0
      %s129 = sshll.u32 %s10, 4
      %s130 = int_to_ptr.hbm [resolvable:$true] %s129
      %s131 = sshll.u32 [#allocation15], 4
      %s132 = int_to_ptr.vmem [resolvable:$true] %s131
      %134 = dma.hbm_to_vmem [thread:$0]  %s130, 32, %s132, [#allocation14]
    $region45: #{tpu_custom_call.1} parent=1 // pred_fallthru
      _
    // Predicated region
    $region46: #{tpu_custom_call.1} parent=1 // pred_check
      _
    $region47: #{tpu_custom_call.1} parent=1 // pred_check_branch
      %136 = sbr.rel (0) target = $region49
    $region48: #{tpu_custom_call.1} parent=1 // pred_region
      %138 = vsyncadd [#allocation17], 0
      %s139 = sshll.u32 %s11, 4
      %s140 = int_to_ptr.hbm [resolvable:$true] %s139
      %s141 = sshll.u32 [#allocation16], 4
      %s142 = int_to_ptr.vmem [resolvable:$true] %s141
      %147 = dma.hbm_to_vmem [thread:$0]  %s140, 8192, %s142, [#allocation17], 256, 256, 16
    $region49: #{tpu_custom_call.1} parent=1 // pred_fallthru
      _
    // Predicated region
    $region50: #{tpu_custom_call.1} parent=1 // pred_check
      _
    $region51: #{tpu_custom_call.1} parent=1 // pred_check_branch
      %149 = sbr.rel (0) target = $region53
    $region52: #{tpu_custom_call.1} parent=1 // pred_region
      _
    $region53: #{tpu_custom_call.1} parent=1 // pred_fallthru
      _
    // Predicated region
    $region54: #{tpu_custom_call.1} parent=1 // pred_check
      _
    $region55: #{tpu_custom_call.1} parent=1 // pred_check_branch
      %151 = sbr.rel (0) target = $region57
    $region56: #{tpu_custom_call.1} parent=1 // pred_region
      %153 = vsyncadd [#allocation17], 0
      %s154 = sshll.u32 %s13, 4
      %s155 = int_to_ptr.hbm [resolvable:$true] %s154
      %s156 = sshll.u32 [#allocation18], 4
      %s157 = int_to_ptr.vmem [resolvable:$true] %s156
      %162 = dma.hbm_to_vmem [thread:$0]  %s155, 4096, %s157, [#allocation17], 64, 64, 4
    $region57: #{tpu_custom_call.1} parent=1 // pred_fallthru
      _
    // Predicated region
    $region58: #{tpu_custom_call.1} parent=1 // pred_check
      _
    $region59: #{tpu_custom_call.1} parent=1 // pred_check_branch
      %164 = sbr.rel (0) target = $region61
    $region60: #{tpu_custom_call.1} parent=1 // pred_region
      _
    $region61: #{tpu_custom_call.1} parent=1 // pred_fallthru
      _
    // Predicated region
    $region62: #{tpu_custom_call.1} parent=1 // pred_check
      _
    $region63: #{tpu_custom_call.1} parent=1 // pred_check_branch
      %166 = sbr.rel (0) target = $region65
    $region64: #{tpu_custom_call.1} parent=1 // pred_region
      %168 = dma.done [#allocation3], 64
    $region65: #{tpu_custom_call.1} parent=1 // pred_fallthru
      _
    // Predicated region
    $region66: #{tpu_custom_call.1} parent=1 // pred_check
      _
    $region67: #{tpu_custom_call.1} parent=1 // pred_check_branch
      %170 = sbr.rel (0) target = $region69
    $region68: #{tpu_custom_call.1} parent=1 // pred_region
      %172 = dma.done [#allocation5], 16
    $region69: #{tpu_custom_call.1} parent=1 // pred_fallthru
      _
    // Predicated region
    $region70: #{tpu_custom_call.1} parent=1 // pred_check
      _
    $region71: #{tpu_custom_call.1} parent=1 // pred_check_branch
      %174 = sbr.rel (0) target = $region73
    $region72: #{tpu_custom_call.1} parent=1 // pred_region
      %176 = dma.done [#allocation5], 128
    $region73: #{tpu_custom_call.1} parent=1 // pred_fallthru
      _
    // Predicated region
    $region74: #{tpu_custom_call.1} parent=1 // pred_check
      _
    $region75: #{tpu_custom_call.1} parent=1 // pred_check_branch
      %178 = sbr.rel (0) target = $region77
    $region76: #{tpu_custom_call.1} parent=1 // pred_region
      %180 = dma.done [#allocation8], 16
    $region77: #{tpu_custom_call.1} parent=1 // pred_fallthru
      _
    // Predicated region
    $region78: #{tpu_custom_call.1} parent=1 // pred_check
      _
    $region79: #{tpu_custom_call.1} parent=1 // pred_check_branch
      %182 = sbr.rel (0) target = $region81
    $region80: #{tpu_custom_call.1} parent=1 // pred_region
      %184 = dma.done [#allocation8], 16
    $region81: #{tpu_custom_call.1} parent=1 // pred_fallthru
      _
    // Predicated region
    $region82: #{tpu_custom_call.1} parent=1 // pred_check
      _
    $region83: #{tpu_custom_call.1} parent=1 // pred_check_branch
      %186 = sbr.rel (0) target = $region85
    $region84: #{tpu_custom_call.1} parent=1 // pred_region
      %188 = dma.done [#allocation11], 512
    $region85: #{tpu_custom_call.1} parent=1 // pred_fallthru
      _
    // Predicated region
    $region86: #{tpu_custom_call.1} parent=1 // pred_check
      _
    $region87: #{tpu_custom_call.1} parent=1 // pred_check_branch
      %190 = sbr.rel (0) target = $region89
    $region88: #{tpu_custom_call.1} parent=1 // pred_region
      %192 = dma.done [#allocation11], 16
    $region89: #{tpu_custom_call.1} parent=1 // pred_fallthru
      _
    // Predicated region
    $region90: #{tpu_custom_call.1} parent=1 // pred_check
      _
    $region91: #{tpu_custom_call.1} parent=1 // pred_check_branch
      %194 = sbr.rel (0) target = $region93
    $region92: #{tpu_custom_call.1} parent=1 // pred_region
      %196 = dma.done [#allocation14], 2048
    $region93: #{tpu_custom_call.1} parent=1 // pred_fallthru
      _
    // Predicated region
    $region94: #{tpu_custom_call.1} parent=1 // pred_check
      _
    $region95: #{tpu_custom_call.1} parent=1 // pred_check_branch
      %198 = sbr.rel (0) target = $region97
    $region96: #{tpu_custom_call.1} parent=1 // pred_region
      %200 = dma.done [#allocation14], 32
    $region97: #{tpu_custom_call.1} parent=1 // pred_fallthru
      _
    // Predicated region
    $region98: #{tpu_custom_call.1} parent=1 // pred_check
      _
    $region99: #{tpu_custom_call.1} parent=1 // pred_check_branch
      %202 = sbr.rel (0) target = $region101
    $region100: #{tpu_custom_call.1} parent=1 // pred_region
      %204 = dma.done [#allocation17], 8192
    $region101: #{tpu_custom_call.1} parent=1 // pred_fallthru
      _
    // Predicated region
    $region102: #{tpu_custom_call.1} parent=1 // pred_check
      _
    $region103: #{tpu_custom_call.1} parent=1 // pred_check_branch
      %206 = sbr.rel (0) target = $region105
    $region104: #{tpu_custom_call.1} parent=1 // pred_region
      %208 = dma.done [#allocation17], 4096
    $region105: #{tpu_custom_call.1} parent=1 // pred_fallthru
      _
    %v210 = vld [vmem:[%s0] sm:$0xf]
    %v211 = vld [vmem:[%s0 + $0x4] sm:$0xf]
    %v212 = vld [vmem:[#allocation2] sm:$0xf]
    %v213 = vld [vmem:[#allocation4] sm:$0x1]
    %v215 = vperm.slane %v213, 0
    %v219 = vunpack.c.l.b16 %v210
    %v220 = vunpack.c.l.b16 %v211
    %v221 = vpack.c.b16 %v220, %v219
    %vm222 = vcmask 64512
    %v224 = vsel %vm222, %v221, 0
    %vm226 = vcmask 1043456
    %v228 = vsel %vm226, %v212, 0
    %230 = vmatpush.bf16.msra.mxu0 0
    %231 = vmatpush.bf16.msra.mxu0 0
    %232 = vmatpush.bf16.msra.mxu0 0
    %233 = vmatpush.bf16.msra.mxu0 0
    %234 = vmatpush.bf16.msra.mxu0 0
    %235 = vmatpush.bf16.msra.mxu0 0
    %236 = vmatpush.bf16.msra.mxu0 0
    %237 = vmatpush.bf16.msra.mxu0 %v228
    %238 = vmatmul.bf16.gmra.mxu0 %v224
    %v239 = vpop.f32.mrf.mxu0
    %v240 = vadd.f32 %v215, %v239
    %v241 = vpop.f32.mrf.mxu0
    %v242 = vadd.f32 %v215, %v241
    %243 = vdwg.mxu0
    %v244 = vmax.f32 %v240, 0.0
    %v245 = vmax.f32 %v242, 0.0
    %v246 = vpack.c.bf16 %v245, %v244
    %v247 = vld [vmem:[#allocation6] sm:$0xf]
    %v248 = vld [vmem:[#allocation6 + $0x4] sm:$0xf]
    %v249 = vld [vmem:[#allocation7] sm:$0x1]
    %v251 = vperm.slane %v249, 0
    %v255 = vunpack.c.l.b16 %v247
    %v256 = vunpack.c.l.b16 %v248
    %v257 = vpack.c.b16 %v256, %v255
    %vm259 = vcmask 130048
    %v261 = vsel %vm259, %v246, 0
    %263 = vmatpush.bf16.msra.mxu0 0
    %264 = vmatpush.bf16.msra.mxu0 0
    %265 = vmatpush.bf16.msra.mxu0 0
    %266 = vmatpush.bf16.msra.mxu0 0
    %267 = vmatpush.bf16.msra.mxu0 0
    %268 = vmatpush.bf16.msra.mxu0 0
    %269 = vmatpush.bf16.msra.mxu0 0
    %270 = vmatpush.bf16.msra.mxu0 %v257
    %271 = vmatmul.bf16.gmra.mxu0 %v261
    %v272 = vpop.f32.mrf.mxu0
    %v273 = vadd.f32 %v251, %v272
    %v274 = vpop.f32.mrf.mxu0
    %v275 = vadd.f32 %v251, %v274
    %276 = vdwg.mxu0
    %v277 = vmax.f32 %v273, 0.0
    %v278 = vmax.f32 %v275, 0.0
    %v279 = vpack.c.bf16 %v278, %v277
    %v280 = vld [vmem:[%s5] sm:$0xf]
    %v281 = vld [vmem:[%s5 + $0x4] sm:$0xf]
    %v282 = vld [vmem:[%s5 + $0x8] sm:$0xf]
    %v283 = vld [vmem:[%s5 + $0xc] sm:$0xf]
    %v284 = vld [vmem:[#allocation9] sm:$0x1]
    %v286 = vperm.slane %v284, 0
    %v292 = vunpack.c.l.b16 %v280
    %v293 = vunpack.c.l.b16 %v281
    %v294 = vunpack.c.l.b16 %v282
    %v295 = vunpack.c.l.b16 %v283
    %v296 = vpack.c.b16 %v293, %v292
    %v297 = vpack.c.b16 %v295, %v294
    %vm300 = vcmask 261120
    %v302 = vsel %vm300, %v279, 0
    %304 = vmatpush.bf16.msra.mxu0 0
    %305 = vmatpush.bf16.msra.mxu0 0
    %306 = vmatpush.bf16.msra.mxu0 0
    %307 = vmatpush.bf16.msra.mxu0 0
    %308 = vmatpush.bf16.msra.mxu0 0
    %309 = vmatpush.bf16.msra.mxu0 0
    %310 = vmatpush.bf16.msra.mxu0 %v297
    %311 = vmatpush.bf16.msra.mxu0 %v296
    %312 = vmatmul.bf16.gmra.mxu0 %v302
    %v313 = vpop.f32.mrf.mxu0
    %v314 = vadd.f32 %v286, %v313
    %v315 = vpop.f32.mrf.mxu0
    %v316 = vadd.f32 %v286, %v315
    %317 = vdwg.mxu0
    %v318 = vmax.f32 %v314, 0.0
    %v319 = vmax.f32 %v316, 0.0
    %v320 = vpack.c.bf16 %v319, %v318
    %v321 = vld [vmem:[#allocation10] sm:$0xf]
    %v322 = vld [vmem:[#allocation10 + $0x4] sm:$0xf]
    %v323 = vld [vmem:[#allocation10 + $0x8] sm:$0xf]
    %v324 = vld [vmem:[#allocation10 + $0xc] sm:$0xf]
    %v325 = vld [vmem:[#allocation10 + $0x10] sm:$0xf]
    %v326 = vld [vmem:[#allocation10 + $0x14] sm:$0xf]
    %v327 = vld [vmem:[#allocation10 + $0x18] sm:$0xf]
    %v328 = vld [vmem:[#allocation10 + $0x1c] sm:$0xf]
    %v329 = vld [vmem:[#allocation12] sm:$0x1]
    %v331 = vperm.slane %v329, 0
    %v341 = vunpack.c.l.b16 %v321
    %v342 = vunpack.c.l.b16 %v322
    %v343 = vunpack.c.l.b16 %v323
    %v344 = vunpack.c.l.b16 %v324
    %v345 = vunpack.c.l.b16 %v325
    %v346 = vunpack.c.l.b16 %v326
    %v347 = vunpack.c.l.b16 %v327
    %v348 = vunpack.c.l.b16 %v328
    %v349 = vpack.c.b16 %v342, %v341
    %v350 = vpack.c.b16 %v344, %v343
    %v351 = vpack.c.b16 %v346, %v345
    %v352 = vpack.c.b16 %v348, %v347
    %vm357 = vcmask 523264
    %v359 = vsel %vm357, %v320, 0
    %361 = vmatpush.bf16.msra.mxu0 0
    %362 = vmatpush.bf16.msra.mxu0 0
    %363 = vmatpush.bf16.msra.mxu0 0
    %364 = vmatpush.bf16.msra.mxu0 0
    %365 = vmatpush.bf16.msra.mxu0 %v352
    %366 = vmatpush.bf16.msra.mxu0 %v351
    %367 = vmatpush.bf16.msra.mxu0 %v350
    %368 = vmatpush.bf16.msra.mxu0 %v349
    %369 = vmatmul.bf16.gmra.mxu0 %v359
    %v370 = vpop.f32.mrf.mxu0
    %v371 = vadd.f32 %v331, %v370
    %v372 = vpop.f32.mrf.mxu0
    %v373 = vadd.f32 %v331, %v372
    %374 = vdwg.mxu0
    %v375 = vmax.f32 %v371, 0.0
    %v376 = vmax.f32 %v373, 0.0
    %v377 = vpack.c.bf16 %v376, %v375
    %v378 = vld [vmem:[#allocation13] sm:$0xff]
    %v379 = vld [vmem:[#allocation13 + $0x8] sm:$0xff]
    %v380 = vld [vmem:[#allocation13 + $0x10] sm:$0xff]
    %v381 = vld [vmem:[#allocation13 + $0x18] sm:$0xff]
    %v382 = vld [vmem:[#allocation13 + $0x20] sm:$0xff]
    %v383 = vld [vmem:[#allocation13 + $0x28] sm:$0xff]
    %v384 = vld [vmem:[#allocation13 + $0x30] sm:$0xff]
    %v385 = vld [vmem:[#allocation13 + $0x38] sm:$0xff]
    %v386 = vld [vmem:[#allocation13 + $0x40] sm:$0xff]
    %v387 = vld [vmem:[#allocation13 + $0x48] sm:$0xff]
    %v388 = vld [vmem:[#allocation13 + $0x50] sm:$0xff]
    %v389 = vld [vmem:[#allocation13 + $0x58] sm:$0xff]
    %v390 = vld [vmem:[#allocation13 + $0x60] sm:$0xff]
    %v391 = vld [vmem:[#allocation13 + $0x68] sm:$0xff]
    %v392 = vld [vmem:[#allocation13 + $0x70] sm:$0xff]
    %v393 = vld [vmem:[#allocation13 + $0x78] sm:$0xff]
    %v394 = vld [vmem:[#allocation15] sm:$0x3]
    %v396 = vperm.slane %v394, 0
    %v397 = vperm.slane %v394, 1
    %v416 = vunpack.c.l.b16 %v378
    %v417 = vunpack.c.h.b16 %v378
    %v418 = vunpack.c.l.b16 %v379
    %v419 = vunpack.c.h.b16 %v379
    %v420 = vunpack.c.l.b16 %v380
    %v421 = vunpack.c.h.b16 %v380
    %v422 = vunpack.c.l.b16 %v381
    %v423 = vunpack.c.h.b16 %v381
    %v424 = vunpack.c.l.b16 %v382
    %v425 = vunpack.c.h.b16 %v382
    %v426 = vunpack.c.l.b16 %v383
    %v427 = vunpack.c.h.b16 %v383
    %v428 = vunpack.c.l.b16 %v384
    %v429 = vunpack.c.h.b16 %v384
    %v430 = vunpack.c.l.b16 %v385
    %v431 = vunpack.c.h.b16 %v385
    %v432 = vunpack.c.l.b16 %v386
    %v433 = vunpack.c.h.b16 %v386
    %v434 = vunpack.c.l.b16 %v387
    %v435 = vunpack.c.h.b16 %v387
    %v436 = vunpack.c.l.b16 %v388
    %v437 = vunpack.c.h.b16 %v388
    %v438 = vunpack.c.l.b16 %v389
    %v439 = vunpack.c.h.b16 %v389
    %v440 = vunpack.c.l.b16 %v390
    %v441 = vunpack.c.h.b16 %v390
    %v442 = vunpack.c.l.b16 %v391
    %v443 = vunpack.c.h.b16 %v391
    %v444 = vunpack.c.l.b16 %v392
    %v445 = vunpack.c.h.b16 %v392
    %v446 = vunpack.c.l.b16 %v393
    %v447 = vunpack.c.h.b16 %v393
    %v448 = vpack.c.b16 %v418, %v416
    %v449 = vpack.c.b16 %v419, %v417
    %v450 = vpack.c.b16 %v422, %v420
    %v451 = vpack.c.b16 %v423, %v421
    %v452 = vpack.c.b16 %v426, %v424
    %v453 = vpack.c.b16 %v427, %v425
    %v454 = vpack.c.b16 %v430, %v428
    %v455 = vpack.c.b16 %v431, %v429
    %v456 = vpack.c.b16 %v434, %v432
    %v457 = vpack.c.b16 %v435, %v433
    %v458 = vpack.c.b16 %v438, %v436
    %v459 = vpack.c.b16 %v439, %v437
    %v460 = vpack.c.b16 %v442, %v440
    %v461 = vpack.c.b16 %v443, %v441
    %v462 = vpack.c.b16 %v446, %v444
    %v463 = vpack.c.b16 %v447, %v445
    %480 = vmatpush.bf16.msra.mxu0 %v462
    %481 = vmatpush.bf16.msra.mxu0 %v460
    %482 = vmatpush.bf16.msra.mxu0 %v458
    %483 = vmatpush.bf16.msra.mxu0 %v456
    %484 = vmatpush.bf16.msra.mxu0 %v454
    %485 = vmatpush.bf16.msra.mxu0 %v452
    %486 = vmatpush.bf16.msra.mxu0 %v450
    %487 = vmatpush.bf16.msra.mxu0 %v448
    %488 = vmatmul.bf16.gmra.mxu0 %v377
    %v489 = vpop.f32.mrf.mxu0
    %v490 = vadd.f32 %v396, %v489
    %v491 = vpop.f32.mrf.mxu0
    %v492 = vadd.f32 %v396, %v491
    %493 = vdwg.mxu0
    %494 = vmatpush.bf16.msra.mxu0 %v463
    %495 = vmatpush.bf16.msra.mxu0 %v461
    %496 = vmatpush.bf16.msra.mxu0 %v459
    %497 = vmatpush.bf16.msra.mxu0 %v457
    %498 = vmatpush.bf16.msra.mxu0 %v455
    %499 = vmatpush.bf16.msra.mxu0 %v453
    %500 = vmatpush.bf16.msra.mxu0 %v451
    %501 = vmatpush.bf16.msra.mxu0 %v449
    %502 = vmatmul.bf16.gmra.mxu0 %v377
    %v503 = vpop.f32.mrf.mxu0
    %v504 = vadd.f32 %v397, %v503
    %v505 = vpop.f32.mrf.mxu0
    %v506 = vadd.f32 %v397, %v505
    %507 = vdwg.mxu0
    %v508 = vmax.f32 %v490, 0.0
    %v509 = vmax.f32 %v504, 0.0
    %v510 = vmax.f32 %v492, 0.0
    %v511 = vmax.f32 %v506, 0.0
    %v512 = vpack.c.bf16 %v510, %v508
    %v513 = vpack.c.bf16 %v511, %v509
    %v514 = vld [vmem:[#allocation16] sm:$0xff]
    %v515 = vld [vmem:[#allocation16 + $0x8] sm:$0xff]
    %v516 = vld [vmem:[#allocation16 + $0x10] sm:$0xff]
    %v517 = vld [vmem:[#allocation16 + $0x18] sm:$0xff]
    %v518 = vld [vmem:[#allocation16 + $0x20] sm:$0xff]
    %v519 = vld [vmem:[#allocation16 + $0x28] sm:$0xff]
    %v520 = vld [vmem:[#allocation16 + $0x30] sm:$0xff]
    %v521 = vld [vmem:[#allocation16 + $0x38] sm:$0xff]
    %v522 = vld [vmem:[#allocation16 + $0x40] sm:$0xff]
    %v523 = vld [vmem:[#allocation16 + $0x48] sm:$0xff]
    %v524 = vld [vmem:[#allocation16 + $0x50] sm:$0xff]
    %v525 = vld [vmem:[#allocation16 + $0x58] sm:$0xff]
    %v526 = vld [vmem:[#allocation16 + $0x60] sm:$0xff]
    %v527 = vld [vmem:[#allocation16 + $0x68] sm:$0xff]
    %v528 = vld [vmem:[#allocation16 + $0x70] sm:$0xff]
    %v529 = vld [vmem:[#allocation16 + $0x78] sm:$0xff]
    %v530 = vld [vmem:[#allocation16 + $0x80] sm:$0xff]
    %v531 = vld [vmem:[#allocation16 + $0x88] sm:$0xff]
    %v532 = vld [vmem:[#allocation16 + $0x90] sm:$0xff]
    %v533 = vld [vmem:[#allocation16 + $0x98] sm:$0xff]
    %v534 = vld [vmem:[#allocation16 + $0xa0] sm:$0xff]
    %v535 = vld [vmem:[#allocation16 + $0xa8] sm:$0xff]
    %v536 = vld [vmem:[#allocation16 + $0xb0] sm:$0xff]
    %v537 = vld [vmem:[#allocation16 + $0xb8] sm:$0xff]
    %v538 = vld [vmem:[#allocation16 + $0xc0] sm:$0xff]
    %v539 = vld [vmem:[#allocation16 + $0xc8] sm:$0xff]
    %v540 = vld [vmem:[#allocation16 + $0xd0] sm:$0xff]
    %v541 = vld [vmem:[#allocation16 + $0xd8] sm:$0xff]
    %v542 = vld [vmem:[#allocation16 + $0xe0] sm:$0xff]
    %v543 = vld [vmem:[#allocation16 + $0xe8] sm:$0xff]
    %v544 = vld [vmem:[#allocation16 + $0xf0] sm:$0xff]
    %v545 = vld [vmem:[#allocation16 + $0xf8] sm:$0xff]
    %v546 = vld [vmem:[#allocation16 + $0x100] sm:$0xff]
    %v547 = vld [vmem:[#allocation16 + $0x108] sm:$0xff]
    %v548 = vld [vmem:[#allocation16 + $0x110] sm:$0xff]
    %v549 = vld [vmem:[#allocation16 + $0x118] sm:$0xff]
    %v550 = vld [vmem:[#allocation16 + $0x120] sm:$0xff]
    %v551 = vld [vmem:[#allocation16 + $0x128] sm:$0xff]
    %v552 = vld [vmem:[#allocation16 + $0x130] sm:$0xff]
    %v553 = vld [vmem:[#allocation16 + $0x138] sm:$0xff]
    %v554 = vld [vmem:[#allocation16 + $0x140] sm:$0xff]
    %v555 = vld [vmem:[#allocation16 + $0x148] sm:$0xff]
    %v556 = vld [vmem:[#allocation16 + $0x150] sm:$0xff]
    %v557 = vld [vmem:[#allocation16 + $0x158] sm:$0xff]
    %v558 = vld [vmem:[#allocation16 + $0x160] sm:$0xff]
    %v559 = vld [vmem:[#allocation16 + $0x168] sm:$0xff]
    %v560 = vld [vmem:[#allocation16 + $0x170] sm:$0xff]
    %v561 = vld [vmem:[#allocation16 + $0x178] sm:$0xff]
    %v562 = vld [vmem:[#allocation16 + $0x180] sm:$0xff]
    %v563 = vld [vmem:[#allocation16 + $0x188] sm:$0xff]
    %v564 = vld [vmem:[#allocation16 + $0x190] sm:$0xff]
    %v565 = vld [vmem:[#allocation16 + $0x198] sm:$0xff]
    %v566 = vld [vmem:[#allocation16 + $0x1a0] sm:$0xff]
    %v567 = vld [vmem:[#allocation16 + $0x1a8] sm:$0xff]
    %v568 = vld [vmem:[#allocation16 + $0x1b0] sm:$0xff]
    %v569 = vld [vmem:[#allocation16 + $0x1b8] sm:$0xff]
    %v570 = vld [vmem:[#allocation16 + $0x1c0] sm:$0xff]
    %v571 = vld [vmem:[#allocation16 + $0x1c8] sm:$0xff]
    %v572 = vld [vmem:[#allocation16 + $0x1d0] sm:$0xff]
    %v573 = vld [vmem:[#allocation16 + $0x1d8] sm:$0xff]
    %v574 = vld [vmem:[#allocation16 + $0x1e0] sm:$0xff]
    %v575 = vld [vmem:[#allocation16 + $0x1e8] sm:$0xff]
    %v576 = vld [vmem:[#allocation16 + $0x1f0] sm:$0xff]
    %v577 = vld [vmem:[#allocation16 + $0x1f8] sm:$0xff]
    %v578 = vld [vmem:[%s12] sm:$0xf]
    %v580 = vperm.slane %v578, 0
    %v581 = vperm.slane %v578, 1
    %v582 = vperm.slane %v578, 2
    %v583 = vperm.slane %v578, 3
    %v652 = vunpack.c.l.b16 %v514
    %v653 = vunpack.c.h.b16 %v514
    %v654 = vunpack.c.l.b16 %v515
    %v655 = vunpack.c.h.b16 %v515
    %v656 = vunpack.c.l.b16 %v516
    %v657 = vunpack.c.h.b16 %v516
    %v658 = vunpack.c.l.b16 %v517
    %v659 = vunpack.c.h.b16 %v517
    %v660 = vunpack.c.l.b16 %v518
    %v661 = vunpack.c.h.b16 %v518
    %v662 = vunpack.c.l.b16 %v519
    %v663 = vunpack.c.h.b16 %v519
    %v664 = vunpack.c.l.b16 %v520
    %v665 = vunpack.c.h.b16 %v520
    %v666 = vunpack.c.l.b16 %v521
    %v667 = vunpack.c.h.b16 %v521
    %v668 = vunpack.c.l.b16 %v522
    %v669 = vunpack.c.h.b16 %v522
    %v670 = vunpack.c.l.b16 %v523
    %v671 = vunpack.c.h.b16 %v523
    %v672 = vunpack.c.l.b16 %v524
    %v673 = vunpack.c.h.b16 %v524
    %v674 = vunpack.c.l.b16 %v525
    %v675 = vunpack.c.h.b16 %v525
    %v676 = vunpack.c.l.b16 %v526
    %v677 = vunpack.c.h.b16 %v526
    %v678 = vunpack.c.l.b16 %v527
    %v679 = vunpack.c.h.b16 %v527
    %v680 = vunpack.c.l.b16 %v528
    %v681 = vunpack.c.h.b16 %v528
    %v682 = vunpack.c.l.b16 %v529
    %v683 = vunpack.c.h.b16 %v529
    %v684 = vunpack.c.l.b16 %v530
    %v685 = vunpack.c.h.b16 %v530
    %v686 = vunpack.c.l.b16 %v531
    %v687 = vunpack.c.h.b16 %v531
    %v688 = vunpack.c.l.b16 %v532
    %v689 = vunpack.c.h.b16 %v532
    %v690 = vunpack.c.l.b16 %v533
    %v691 = vunpack.c.h.b16 %v533
    %v692 = vunpack.c.l.b16 %v534
    %v693 = vunpack.c.h.b16 %v534
    %v694 = vunpack.c.l.b16 %v535
    %v695 = vunpack.c.h.b16 %v535
    %v696 = vunpack.c.l.b16 %v536
    %v697 = vunpack.c.h.b16 %v536
    %v698 = vunpack.c.l.b16 %v537
    %v699 = vunpack.c.h.b16 %v537
    %v700 = vunpack.c.l.b16 %v538
    %v701 = vunpack.c.h.b16 %v538
    %v702 = vunpack.c.l.b16 %v539
    %v703 = vunpack.c.h.b16 %v539
    %v704 = vunpack.c.l.b16 %v540
    %v705 = vunpack.c.h.b16 %v540
    %v706 = vunpack.c.l.b16 %v541
    %v707 = vunpack.c.h.b16 %v541
    %v708 = vunpack.c.l.b16 %v542
    %v709 = vunpack.c.h.b16 %v542
    %v710 = vunpack.c.l.b16 %v543
    %v711 = vunpack.c.h.b16 %v543
    %v712 = vunpack.c.l.b16 %v544
    %v713 = vunpack.c.h.b16 %v544
    %v714 = vunpack.c.l.b16 %v545
    %v715 = vunpack.c.h.b16 %v545
    %v716 = vunpack.c.l.b16 %v546
    %v717 = vunpack.c.h.b16 %v546
    %v718 = vunpack.c.l.b16 %v547
    %v719 = vunpack.c.h.b16 %v547
    %v720 = vunpack.c.l.b16 %v548
    %v721 = vunpack.c.h.b16 %v548
    %v722 = vunpack.c.l.b16 %v549
    %v723 = vunpack.c.h.b16 %v549
    %v724 = vunpack.c.l.b16 %v550
    %v725 = vunpack.c.h.b16 %v550
    %v726 = vunpack.c.l.b16 %v551
    %v727 = vunpack.c.h.b16 %v551
    %v728 = vunpack.c.l.b16 %v552
    %v729 = vunpack.c.h.b16 %v552
    %v730 = vunpack.c.l.b16 %v553
    %v731 = vunpack.c.h.b16 %v553
    %v732 = vunpack.c.l.b16 %v554
    %v733 = vunpack.c.h.b16 %v554
    %v734 = vunpack.c.l.b16 %v555
    %v735 = vunpack.c.h.b16 %v555
    %v736 = vunpack.c.l.b16 %v556
    %v737 = vunpack.c.h.b16 %v556
    %v738 = vunpack.c.l.b16 %v557
    %v739 = vunpack.c.h.b16 %v557
    %v740 = vunpack.c.l.b16 %v558
    %v741 = vunpack.c.h.b16 %v558
    %v742 = vunpack.c.l.b16 %v559
    %v743 = vunpack.c.h.b16 %v559
    %v744 = vunpack.c.l.b16 %v560
    %v745 = vunpack.c.h.b16 %v560
    %v746 = vunpack.c.l.b16 %v561
    %v747 = vunpack.c.h.b16 %v561
    %v748 = vunpack.c.l.b16 %v562
    %v749 = vunpack.c.h.b16 %v562
    %v750 = vunpack.c.l.b16 %v563
    %v751 = vunpack.c.h.b16 %v563
    %v752 = vunpack.c.l.b16 %v564
    %v753 = vunpack.c.h.b16 %v564
    %v754 = vunpack.c.l.b16 %v565
    %v755 = vunpack.c.h.b16 %v565
    %v756 = vunpack.c.l.b16 %v566
    %v757 = vunpack.c.h.b16 %v566
    %v758 = vunpack.c.l.b16 %v567
    %v759 = vunpack.c.h.b16 %v567
    %v760 = vunpack.c.l.b16 %v568
    %v761 = vunpack.c.h.b16 %v568
    %v762 = vunpack.c.l.b16 %v569
    %v763 = vunpack.c.h.b16 %v569
    %v764 = vunpack.c.l.b16 %v570
    %v765 = vunpack.c.h.b16 %v570
    %v766 = vunpack.c.l.b16 %v571
    %v767 = vunpack.c.h.b16 %v571
    %v768 = vunpack.c.l.b16 %v572
    %v769 = vunpack.c.h.b16 %v572
    %v770 = vunpack.c.l.b16 %v573
    %v771 = vunpack.c.h.b16 %v573
    %v772 = vunpack.c.l.b16 %v574
    %v773 = vunpack.c.h.b16 %v574
    %v774 = vunpack.c.l.b16 %v575
    %v775 = vunpack.c.h.b16 %v575
    %v776 = vunpack.c.l.b16 %v576
    %v777 = vunpack.c.h.b16 %v576
    %v778 = vunpack.c.l.b16 %v577
    %v779 = vunpack.c.h.b16 %v577
    %v780 = vpack.c.b16 %v656, %v652
    %v781 = vpack.c.b16 %v657, %v653
    %v782 = vpack.c.b16 %v658, %v654
    %v783 = vpack.c.b16 %v659, %v655
    %v784 = vpack.c.b16 %v664, %v660
    %v785 = vpack.c.b16 %v665, %v661
    %v786 = vpack.c.b16 %v666, %v662
    %v787 = vpack.c.b16 %v667, %v663
    %v788 = vpack.c.b16 %v672, %v668
    %v789 = vpack.c.b16 %v673, %v669
    %v790 = vpack.c.b16 %v674, %v670
    %v791 = vpack.c.b16 %v675, %v671
    %v792 = vpack.c.b16 %v680, %v676
    %v793 = vpack.c.b16 %v681, %v677
    %v794 = vpack.c.b16 %v682, %v678
    %v795 = vpack.c.b16 %v683, %v679
    %v796 = vpack.c.b16 %v688, %v684
    %v797 = vpack.c.b16 %v689, %v685
    %v798 = vpack.c.b16 %v690, %v686
    %v799 = vpack.c.b16 %v691, %v687
    %v800 = vpack.c.b16 %v696, %v692
    %v801 = vpack.c.b16 %v697, %v693
    %v802 = vpack.c.b16 %v698, %v694
    %v803 = vpack.c.b16 %v699, %v695
    %v804 = vpack.c.b16 %v704, %v700
    %v805 = vpack.c.b16 %v705, %v701
    %v806 = vpack.c.b16 %v706, %v702
    %v807 = vpack.c.b16 %v707, %v703
    %v808 = vpack.c.b16 %v712, %v708
    %v809 = vpack.c.b16 %v713, %v709
    %v810 = vpack.c.b16 %v714, %v710
    %v811 = vpack.c.b16 %v715, %v711
    %v812 = vpack.c.b16 %v720, %v716
    %v813 = vpack.c.b16 %v721, %v717
    %v814 = vpack.c.b16 %v722, %v718
    %v815 = vpack.c.b16 %v723, %v719
    %v816 = vpack.c.b16 %v728, %v724
    %v817 = vpack.c.b16 %v729, %v725
    %v818 = vpack.c.b16 %v730, %v726
    %v819 = vpack.c.b16 %v731, %v727
    %v820 = vpack.c.b16 %v736, %v732
    %v821 = vpack.c.b16 %v737, %v733
    %v822 = vpack.c.b16 %v738, %v734
    %v823 = vpack.c.b16 %v739, %v735
    %v824 = vpack.c.b16 %v744, %v740
    %v825 = vpack.c.b16 %v745, %v741
    %v826 = vpack.c.b16 %v746, %v742
    %v827 = vpack.c.b16 %v747, %v743
    %v828 = vpack.c.b16 %v752, %v748
    %v829 = vpack.c.b16 %v753, %v749
    %v830 = vpack.c.b16 %v754, %v750
    %v831 = vpack.c.b16 %v755, %v751
    %v832 = vpack.c.b16 %v760, %v756
    %v833 = vpack.c.b16 %v761, %v757
    %v834 = vpack.c.b16 %v762, %v758
    %v835 = vpack.c.b16 %v763, %v759
    %v836 = vpack.c.b16 %v768, %v764
    %v837 = vpack.c.b16 %v769, %v765
    %v838 = vpack.c.b16 %v770, %v766
    %v839 = vpack.c.b16 %v771, %v767
    %v840 = vpack.c.b16 %v776, %v772
    %v841 = vpack.c.b16 %v777, %v773
    %v842 = vpack.c.b16 %v778, %v774
    %v843 = vpack.c.b16 %v779, %v775
    %908 = vmatpush.bf16.msra.mxu0 %v808
    %909 = vmatpush.bf16.msra.mxu0 %v804
    %910 = vmatpush.bf16.msra.mxu0 %v800
    %911 = vmatpush.bf16.msra.mxu0 %v796
    %912 = vmatpush.bf16.msra.mxu0 %v792
    %913 = vmatpush.bf16.msra.mxu0 %v788
    %914 = vmatpush.bf16.msra.mxu0 %v784
    %915 = vmatpush.bf16.msra.mxu0 %v780
    %916 = vmatmul.bf16.gmra.mxu0 %v512
    %v917 = vpop.f32.mrf.mxu0
    %v918 = vadd.f32 %v580, %v917
    %v919 = vpop.f32.mrf.mxu0
    %v920 = vadd.f32 %v580, %v919
    %921 = vdwg.mxu0
    %922 = vmatpush.bf16.msra.mxu0 %v840
    %923 = vmatpush.bf16.msra.mxu0 %v836
    %924 = vmatpush.bf16.msra.mxu0 %v832
    %925 = vmatpush.bf16.msra.mxu0 %v828
    %926 = vmatpush.bf16.msra.mxu0 %v824
    %927 = vmatpush.bf16.msra.mxu0 %v820
    %928 = vmatpush.bf16.msra.mxu0 %v816
    %929 = vmatpush.bf16.msra.mxu0 %v812
    %930 = vmatmul.bf16.gmra.mxu0 %v513
    %v931 = vpop.f32.mrf.mxu0
    %v932 = vadd.f32 %v918, %v931
    %v933 = vpop.f32.mrf.mxu0
    %v934 = vadd.f32 %v920, %v933
    %935 = vdwg.mxu0
    %936 = vmatpush.bf16.msra.mxu0 %v809
    %937 = vmatpush.bf16.msra.mxu0 %v805
    %938 = vmatpush.bf16.msra.mxu0 %v801
    %939 = vmatpush.bf16.msra.mxu0 %v797
    %940 = vmatpush.bf16.msra.mxu0 %v793
    %941 = vmatpush.bf16.msra.mxu0 %v789
    %942 = vmatpush.bf16.msra.mxu0 %v785
    %943 = vmatpush.bf16.msra.mxu0 %v781
    %944 = vmatmul.bf16.gmra.mxu0 %v512
    %v945 = vpop.f32.mrf.mxu0
    %v946 = vadd.f32 %v581, %v945
    %v947 = vpop.f32.mrf.mxu0
    %v948 = vadd.f32 %v581, %v947
    %949 = vdwg.mxu0
    %950 = vmatpush.bf16.msra.mxu0 %v841
    %951 = vmatpush.bf16.msra.mxu0 %v837
    %952 = vmatpush.bf16.msra.mxu0 %v833
    %953 = vmatpush.bf16.msra.mxu0 %v829
    %954 = vmatpush.bf16.msra.mxu0 %v825
    %955 = vmatpush.bf16.msra.mxu0 %v821
    %956 = vmatpush.bf16.msra.mxu0 %v817
    %957 = vmatpush.bf16.msra.mxu0 %v813
    %958 = vmatmul.bf16.gmra.mxu0 %v513
    %v959 = vpop.f32.mrf.mxu0
    %v960 = vadd.f32 %v946, %v959
    %v961 = vpop.f32.mrf.mxu0
    %v962 = vadd.f32 %v948, %v961
    %963 = vdwg.mxu0
    %964 = vmatpush.bf16.msra.mxu0 %v810
    %965 = vmatpush.bf16.msra.mxu0 %v806
    %966 = vmatpush.bf16.msra.mxu0 %v802
    %967 = vmatpush.bf16.msra.mxu0 %v798
    %968 = vmatpush.bf16.msra.mxu0 %v794
    %969 = vmatpush.bf16.msra.mxu0 %v790
    %970 = vmatpush.bf16.msra.mxu0 %v786
    %971 = vmatpush.bf16.msra.mxu0 %v782
    %972 = vmatmul.bf16.gmra.mxu0 %v512
    %v973 = vpop.f32.mrf.mxu0
    %v974 = vadd.f32 %v582, %v973
    %v975 = vpop.f32.mrf.mxu0
    %v976 = vadd.f32 %v582, %v975
    %977 = vdwg.mxu0
    %978 = vmatpush.bf16.msra.mxu0 %v842
    %979 = vmatpush.bf16.msra.mxu0 %v838
    %980 = vmatpush.bf16.msra.mxu0 %v834
    %981 = vmatpush.bf16.msra.mxu0 %v830
    %982 = vmatpush.bf16.msra.mxu0 %v826
    %983 = vmatpush.bf16.msra.mxu0 %v822
    %984 = vmatpush.bf16.msra.mxu0 %v818
    %985 = vmatpush.bf16.msra.mxu0 %v814
    %986 = vmatmul.bf16.gmra.mxu0 %v513
    %v987 = vpop.f32.mrf.mxu0
    %v988 = vadd.f32 %v974, %v987
    %v989 = vpop.f32.mrf.mxu0
    %v990 = vadd.f32 %v976, %v989
    %991 = vdwg.mxu0
    %992 = vmatpush.bf16.msra.mxu0 %v811
    %993 = vmatpush.bf16.msra.mxu0 %v807
    %994 = vmatpush.bf16.msra.mxu0 %v803
    %995 = vmatpush.bf16.msra.mxu0 %v799
    %996 = vmatpush.bf16.msra.mxu0 %v795
    %997 = vmatpush.bf16.msra.mxu0 %v791
    %998 = vmatpush.bf16.msra.mxu0 %v787
    %999 = vmatpush.bf16.msra.mxu0 %v783
    %1000 = vmatmul.bf16.gmra.mxu0 %v512
    %v1001 = vpop.f32.mrf.mxu0
    %v1002 = vadd.f32 %v583, %v1001
    %v1003 = vpop.f32.mrf.mxu0
    %v1004 = vadd.f32 %v583, %v1003
    %1005 = vdwg.mxu0
    %1006 = vmatpush.bf16.msra.mxu0 %v843
    %1007 = vmatpush.bf16.msra.mxu0 %v839
    %1008 = vmatpush.bf16.msra.mxu0 %v835
    %1009 = vmatpush.bf16.msra.mxu0 %v831
    %1010 = vmatpush.bf16.msra.mxu0 %v827
    %1011 = vmatpush.bf16.msra.mxu0 %v823
    %1012 = vmatpush.bf16.msra.mxu0 %v819
    %1013 = vmatpush.bf16.msra.mxu0 %v815
    %1014 = vmatmul.bf16.gmra.mxu0 %v513
    %v1015 = vpop.f32.mrf.mxu0
    %v1016 = vadd.f32 %v1002, %v1015
    %v1017 = vpop.f32.mrf.mxu0
    %v1018 = vadd.f32 %v1004, %v1017
    %1019 = vdwg.mxu0
    %v1020 = vmax.f32 %v932, 0.0
    %v1021 = vmax.f32 %v960, 0.0
    %v1022 = vmax.f32 %v988, 0.0
    %v1023 = vmax.f32 %v1016, 0.0
    %v1024 = vmax.f32 %v934, 0.0
    %v1025 = vmax.f32 %v962, 0.0
    %v1026 = vmax.f32 %v990, 0.0
    %v1027 = vmax.f32 %v1018, 0.0
    %v1028 = vpack.c.bf16 %v1024, %v1020
    %v1029 = vpack.c.bf16 %v1025, %v1021
    %v1030 = vpack.c.bf16 %v1026, %v1022
    %v1031 = vpack.c.bf16 %v1027, %v1023
    %v1032 = vld [vmem:[#allocation18] sm:$0xf]
    %v1033 = vld [vmem:[#allocation18 + $0x4] sm:$0xf]
    %v1034 = vld [vmem:[#allocation18 + $0x8] sm:$0xf]
    %v1035 = vld [vmem:[#allocation18 + $0xc] sm:$0xf]
    %v1036 = vld [vmem:[#allocation18 + $0x10] sm:$0xf]
    %v1037 = vld [vmem:[#allocation18 + $0x14] sm:$0xf]
    %v1038 = vld [vmem:[#allocation18 + $0x18] sm:$0xf]
    %v1039 = vld [vmem:[#allocation18 + $0x1c] sm:$0xf]
    %v1040 = vld [vmem:[#allocation18 + $0x20] sm:$0xf]
    %v1041 = vld [vmem:[#allocation18 + $0x24] sm:$0xf]
    %v1042 = vld [vmem:[#allocation18 + $0x28] sm:$0xf]
    %v1043 = vld [vmem:[#allocation18 + $0x2c] sm:$0xf]
    %v1044 = vld [vmem:[#allocation18 + $0x30] sm:$0xf]
    %v1045 = vld [vmem:[#allocation18 + $0x34] sm:$0xf]
    %v1046 = vld [vmem:[#allocation18 + $0x38] sm:$0xf]
    %v1047 = vld [vmem:[#allocation18 + $0x3c] sm:$0xf]
    %v1048 = vld [vmem:[#allocation18 + $0x40] sm:$0xf]
    %v1049 = vld [vmem:[#allocation18 + $0x44] sm:$0xf]
    %v1050 = vld [vmem:[#allocation18 + $0x48] sm:$0xf]
    %v1051 = vld [vmem:[#allocation18 + $0x4c] sm:$0xf]
    %v1052 = vld [vmem:[#allocation18 + $0x50] sm:$0xf]
    %v1053 = vld [vmem:[#allocation18 + $0x54] sm:$0xf]
    %v1054 = vld [vmem:[#allocation18 + $0x58] sm:$0xf]
    %v1055 = vld [vmem:[#allocation18 + $0x5c] sm:$0xf]
    %v1056 = vld [vmem:[#allocation18 + $0x60] sm:$0xf]
    %v1057 = vld [vmem:[#allocation18 + $0x64] sm:$0xf]
    %v1058 = vld [vmem:[#allocation18 + $0x68] sm:$0xf]
    %v1059 = vld [vmem:[#allocation18 + $0x6c] sm:$0xf]
    %v1060 = vld [vmem:[#allocation18 + $0x70] sm:$0xf]
    %v1061 = vld [vmem:[#allocation18 + $0x74] sm:$0xf]
    %v1062 = vld [vmem:[#allocation18 + $0x78] sm:$0xf]
    %v1063 = vld [vmem:[#allocation18 + $0x7c] sm:$0xf]
    %v1064 = vld [vmem:[#allocation18 + $0x80] sm:$0xf]
    %v1065 = vld [vmem:[#allocation18 + $0x84] sm:$0xf]
    %v1066 = vld [vmem:[#allocation18 + $0x88] sm:$0xf]
    %v1067 = vld [vmem:[#allocation18 + $0x8c] sm:$0xf]
    %v1068 = vld [vmem:[#allocation18 + $0x90] sm:$0xf]
    %v1069 = vld [vmem:[#allocation18 + $0x94] sm:$0xf]
    %v1070 = vld [vmem:[#allocation18 + $0x98] sm:$0xf]
    %v1071 = vld [vmem:[#allocation18 + $0x9c] sm:$0xf]
    %v1072 = vld [vmem:[#allocation18 + $0xa0] sm:$0xf]
    %v1073 = vld [vmem:[#allocation18 + $0xa4] sm:$0xf]
    %v1074 = vld [vmem:[#allocation18 + $0xa8] sm:$0xf]
    %v1075 = vld [vmem:[#allocation18 + $0xac] sm:$0xf]
    %v1076 = vld [vmem:[#allocation18 + $0xb0] sm:$0xf]
    %v1077 = vld [vmem:[#allocation18 + $0xb4] sm:$0xf]
    %v1078 = vld [vmem:[#allocation18 + $0xb8] sm:$0xf]
    %v1079 = vld [vmem:[#allocation18 + $0xbc] sm:$0xf]
    %v1080 = vld [vmem:[#allocation18 + $0xc0] sm:$0xf]
    %v1081 = vld [vmem:[#allocation18 + $0xc4] sm:$0xf]
    %v1082 = vld [vmem:[#allocation18 + $0xc8] sm:$0xf]
    %v1083 = vld [vmem:[#allocation18 + $0xcc] sm:$0xf]
    %v1084 = vld [vmem:[#allocation18 + $0xd0] sm:$0xf]
    %v1085 = vld [vmem:[#allocation18 + $0xd4] sm:$0xf]
    %v1086 = vld [vmem:[#allocation18 + $0xd8] sm:$0xf]
    %v1087 = vld [vmem:[#allocation18 + $0xdc] sm:$0xf]
    %v1088 = vld [vmem:[#allocation18 + $0xe0] sm:$0xf]
    %v1089 = vld [vmem:[#allocation18 + $0xe4] sm:$0xf]
    %v1090 = vld [vmem:[#allocation18 + $0xe8] sm:$0xf]
    %v1091 = vld [vmem:[#allocation18 + $0xec] sm:$0xf]
    %v1092 = vld [vmem:[#allocation18 + $0xf0] sm:$0xf]
    %v1093 = vld [vmem:[#allocation18 + $0xf4] sm:$0xf]
    %v1094 = vld [vmem:[#allocation18 + $0xf8] sm:$0xf]
    %v1095 = vld [vmem:[#allocation18 + $0xfc] sm:$0xf]
    %v1096 = vld [vmem:[%s14] sm:$0x1]
    %v1098 = vperm.slane %v1096, 0
    %v1164 = vunpack.c.l.b16 %v1032
    %v1165 = vunpack.c.l.b16 %v1033
    %v1166 = vunpack.c.l.b16 %v1034
    %v1167 = vunpack.c.l.b16 %v1035
    %v1168 = vunpack.c.l.b16 %v1036
    %v1169 = vunpack.c.l.b16 %v1037
    %v1170 = vunpack.c.l.b16 %v1038
    %v1171 = vunpack.c.l.b16 %v1039
    %v1172 = vunpack.c.l.b16 %v1040
    %v1173 = vunpack.c.l.b16 %v1041
    %v1174 = vunpack.c.l.b16 %v1042
    %v1175 = vunpack.c.l.b16 %v1043
    %v1176 = vunpack.c.l.b16 %v1044
    %v1177 = vunpack.c.l.b16 %v1045
    %v1178 = vunpack.c.l.b16 %v1046
    %v1179 = vunpack.c.l.b16 %v1047
    %v1180 = vunpack.c.l.b16 %v1048
    %v1181 = vunpack.c.l.b16 %v1049
    %v1182 = vunpack.c.l.b16 %v1050
    %v1183 = vunpack.c.l.b16 %v1051
    %v1184 = vunpack.c.l.b16 %v1052
    %v1185 = vunpack.c.l.b16 %v1053
    %v1186 = vunpack.c.l.b16 %v1054
    %v1187 = vunpack.c.l.b16 %v1055
    %v1188 = vunpack.c.l.b16 %v1056
    %v1189 = vunpack.c.l.b16 %v1057
    %v1190 = vunpack.c.l.b16 %v1058
    %v1191 = vunpack.c.l.b16 %v1059
    %v1192 = vunpack.c.l.b16 %v1060
    %v1193 = vunpack.c.l.b16 %v1061
    %v1194 = vunpack.c.l.b16 %v1062
    %v1195 = vunpack.c.l.b16 %v1063
    %v1196 = vunpack.c.l.b16 %v1064
    %v1197 = vunpack.c.l.b16 %v1065
    %v1198 = vunpack.c.l.b16 %v1066
    %v1199 = vunpack.c.l.b16 %v1067
    %v1200 = vunpack.c.l.b16 %v1068
    %v1201 = vunpack.c.l.b16 %v1069
    %v1202 = vunpack.c.l.b16 %v1070
    %v1203 = vunpack.c.l.b16 %v1071
    %v1204 = vunpack.c.l.b16 %v1072
    %v1205 = vunpack.c.l.b16 %v1073
    %v1206 = vunpack.c.l.b16 %v1074
    %v1207 = vunpack.c.l.b16 %v1075
    %v1208 = vunpack.c.l.b16 %v1076
    %v1209 = vunpack.c.l.b16 %v1077
    %v1210 = vunpack.c.l.b16 %v1078
    %v1211 = vunpack.c.l.b16 %v1079
    %v1212 = vunpack.c.l.b16 %v1080
    %v1213 = vunpack.c.l.b16 %v1081
    %v1214 = vunpack.c.l.b16 %v1082
    %v1215 = vunpack.c.l.b16 %v1083
    %v1216 = vunpack.c.l.b16 %v1084
    %v1217 = vunpack.c.l.b16 %v1085
    %v1218 = vunpack.c.l.b16 %v1086
    %v1219 = vunpack.c.l.b16 %v1087
    %v1220 = vunpack.c.l.b16 %v1088
    %v1221 = vunpack.c.l.b16 %v1089
    %v1222 = vunpack.c.l.b16 %v1090
    %v1223 = vunpack.c.l.b16 %v1091
    %v1224 = vunpack.c.l.b16 %v1092
    %v1225 = vunpack.c.l.b16 %v1093
    %v1226 = vunpack.c.l.b16 %v1094
    %v1227 = vunpack.c.l.b16 %v1095
    %v1228 = vpack.c.b16 %v1165, %v1164
    %v1229 = vpack.c.b16 %v1167, %v1166
    %v1230 = vpack.c.b16 %v1169, %v1168
    %v1231 = vpack.c.b16 %v1171, %v1170
    %v1232 = vpack.c.b16 %v1173, %v1172
    %v1233 = vpack.c.b16 %v1175, %v1174
    %v1234 = vpack.c.b16 %v1177, %v1176
    %v1235 = vpack.c.b16 %v1179, %v1178
    %v1236 = vpack.c.b16 %v1181, %v1180
    %v1237 = vpack.c.b16 %v1183, %v1182
    %v1238 = vpack.c.b16 %v1185, %v1184
    %v1239 = vpack.c.b16 %v1187, %v1186
    %v1240 = vpack.c.b16 %v1189, %v1188
    %v1241 = vpack.c.b16 %v1191, %v1190
    %v1242 = vpack.c.b16 %v1193, %v1192
    %v1243 = vpack.c.b16 %v1195, %v1194
    %v1244 = vpack.c.b16 %v1197, %v1196
    %v1245 = vpack.c.b16 %v1199, %v1198
    %v1246 = vpack.c.b16 %v1201, %v1200
    %v1247 = vpack.c.b16 %v1203, %v1202
    %v1248 = vpack.c.b16 %v1205, %v1204
    %v1249 = vpack.c.b16 %v1207, %v1206
    %v1250 = vpack.c.b16 %v1209, %v1208
    %v1251 = vpack.c.b16 %v1211, %v1210
    %v1252 = vpack.c.b16 %v1213, %v1212
    %v1253 = vpack.c.b16 %v1215, %v1214
    %v1254 = vpack.c.b16 %v1217, %v1216
    %v1255 = vpack.c.b16 %v1219, %v1218
    %v1256 = vpack.c.b16 %v1221, %v1220
    %v1257 = vpack.c.b16 %v1223, %v1222
    %v1258 = vpack.c.b16 %v1225, %v1224
    %v1259 = vpack.c.b16 %v1227, %v1226
    %1292 = vmatpush.bf16.msra.mxu0 %v1235
    %1293 = vmatpush.bf16.msra.mxu0 %v1234
    %1294 = vmatpush.bf16.msra.mxu0 %v1233
    %1295 = vmatpush.bf16.msra.mxu0 %v1232
    %1296 = vmatpush.bf16.msra.mxu0 %v1231
    %1297 = vmatpush.bf16.msra.mxu0 %v1230
    %1298 = vmatpush.bf16.msra.mxu0 %v1229
    %1299 = vmatpush.bf16.msra.mxu0 %v1228
    %1300 = vmatmul.bf16.gmra.mxu0 %v1028
    %v1301 = vpop.f32.mrf.mxu0
    %v1302 = vadd.f32 %v1098, %v1301
    %v1303 = vpop.f32.mrf.mxu0
    %v1304 = vadd.f32 %v1098, %v1303
    %1305 = vdwg.mxu0
    %1306 = vmatpush.bf16.msra.mxu0 %v1243
    %1307 = vmatpush.bf16.msra.mxu0 %v1242
    %1308 = vmatpush.bf16.msra.mxu0 %v1241
    %1309 = vmatpush.bf16.msra.mxu0 %v1240
    %1310 = vmatpush.bf16.msra.mxu0 %v1239
    %1311 = vmatpush.bf16.msra.mxu0 %v1238
    %1312 = vmatpush.bf16.msra.mxu0 %v1237
    %1313 = vmatpush.bf16.msra.mxu0 %v1236
    %1314 = vmatmul.bf16.gmra.mxu0 %v1029
    %v1315 = vpop.f32.mrf.mxu0
    %v1316 = vadd.f32 %v1302, %v1315
    %v1317 = vpop.f32.mrf.mxu0
    %v1318 = vadd.f32 %v1304, %v1317
    %1319 = vdwg.mxu0
    %1320 = vmatpush.bf16.msra.mxu0 %v1251
    %1321 = vmatpush.bf16.msra.mxu0 %v1250
    %1322 = vmatpush.bf16.msra.mxu0 %v1249
    %1323 = vmatpush.bf16.msra.mxu0 %v1248
    %1324 = vmatpush.bf16.msra.mxu0 %v1247
    %1325 = vmatpush.bf16.msra.mxu0 %v1246
    %1326 = vmatpush.bf16.msra.mxu0 %v1245
    %1327 = vmatpush.bf16.msra.mxu0 %v1244
    %1328 = vmatmul.bf16.gmra.mxu0 %v1030
    %v1329 = vpop.f32.mrf.mxu0
    %v1330 = vadd.f32 %v1316, %v1329
    %v1331 = vpop.f32.mrf.mxu0
    %v1332 = vadd.f32 %v1318, %v1331
    %1333 = vdwg.mxu0
    %1334 = vmatpush.bf16.msra.mxu0 %v1259
    %1335 = vmatpush.bf16.msra.mxu0 %v1258
    %1336 = vmatpush.bf16.msra.mxu0 %v1257
    %1337 = vmatpush.bf16.msra.mxu0 %v1256
    %1338 = vmatpush.bf16.msra.mxu0 %v1255
    %1339 = vmatpush.bf16.msra.mxu0 %v1254
    %1340 = vmatpush.bf16.msra.mxu0 %v1253
    %1341 = vmatpush.bf16.msra.mxu0 %v1252
    %1342 = vmatmul.bf16.gmra.mxu0 %v1031
    %v1343 = vpop.f32.mrf.mxu0
    %v1344 = vadd.f32 %v1330, %v1343
    %v1345 = vpop.f32.mrf.mxu0
    %v1346 = vadd.f32 %v1332, %v1345
    %1347 = vdwg.mxu0
    %vm1348 = vcmask 23552
    %1349 = vst.msk [vmem:[%s15] sm:$0xff] %vm1348, %v1344
    %1350 = vst.msk [vmem:[%s15 + $0x8] sm:$0xff] %vm1348, %v1346
    // Predicated region
    $region106: #{tpu_custom_call.1} parent=1 // pred_check
      _
    $region107: #{tpu_custom_call.1} parent=1 // pred_check_branch
      %1352 = sbr.rel (0) target = $region109
    $region108: #{tpu_custom_call.1} parent=1 // pred_region
      _
    $region109: #{tpu_custom_call.1} parent=1 // pred_fallthru
      _
    // Predicated region
    $region110: #{tpu_custom_call.1} parent=1 // pred_check
      _
    $region111: #{tpu_custom_call.1} parent=1 // pred_check_branch
      %1354 = sbr.rel (0) target = $region113
    $region112: #{tpu_custom_call.1} parent=1 // pred_region
      _
    $region113: #{tpu_custom_call.1} parent=1 // pred_fallthru
      _
    %1355 = vsyncpa [#allocation3], 1
    %1356 = vsyncpa [#allocation5], 1
    %1357 = vsyncpa [#allocation8], 1
    %1358 = vsyncpa [#allocation11], 1
    %1359 = vsyncpa [#allocation14], 1
    %1360 = vsyncpa [#allocation17], 1

</llo_original>
